<compile_context>
chip_gen: v7x
topology: tpu7x:2x2x1
jax: 0.10.0
libtpu: 0.0.40
codegen_flags: <defaults>
</compile_context>

<pallas_src>
import functools

import jax
import jax.numpy as jnp
from jax import lax
from jax.experimental import pallas as pl
from jax.experimental.pallas import tpu as pltpu

# ----------------------------- config (cfg) -----------------------------------
VOCAB_SIZE    = 50           # cfg.input_size
EMBEDDING_DIM = 32           # cfg.embedding_dim
NUM_FILTERS   = 8            # cfg.num_filters
KERNEL_SIZES  = (3, 4, 5)    # cfg.kernel_sizes
# cfg.dropout -> identity at inference  # TODO(synk): training-mode dropout not implemented

BATCH   = 2
SEQ_LEN = 16

OUT_DIM = len(KERNEL_SIZES) * NUM_FILTERS         # 24 (torch.cat output width)
MAX_FS  = max(KERNEL_SIZES)                       # 5
N_PAD   = 128                                     # lane-padded stacked width (>= MAX_FS*OUT_DIM)
V_PAD   = ((VOCAB_SIZE + 127) // 128) * 128       # lane-padded vocab for one-hot gather (128)
BATCH_BLOCK = 8                                   # batch rows per grid step (sublane aligned)


# ----------------------------- Pallas kernel ----------------------------------
def _sentiment_cnn_kernel(tb, L, nf, kernel_sizes, v_pad, n_pad,
                          ids_ref, table_ref, bias_ref, out_ref):
    """ids_ref  : (tb*L, 1) int32   token ids (batch-major, time-minor)
       table_ref: (v_pad, n_pad)    fused emb @ stacked-conv-weights table
                                    (tap-major-outer, branch-major-inner columns)
       bias_ref : (1, n_pad) f32    concatenated conv biases (torch.cat layout)
       out_ref  : (tb, n_pad) f32   lane-padded pooled features
    """
    BL = tb * L
    out_dim = len(kernel_sizes) * nf
    max_fs = max(kernel_sizes)

    # -- fused embedding gather + conv taps: one-hot(ids) @ fused_table (single K=v_pad
    #    MXU matmul; the previous emb-lookup and conv matmuls are folded offline) --
    ids = ids_ref[...]                                               # (BL, 1) i32
    vocab_iota = lax.broadcasted_iota(jnp.int32, (BL, v_pad), 1)     # (BL, v_pad)
    onehot = (vocab_iota == ids).astype(table_ref.dtype)             # 0/1, exact in bf16
    y = jnp.dot(onehot, table_ref[...],
                preferred_element_type=jnp.float32)                  # (BL, n_pad) f32

    # -- tap alignment + summation fused: for tap j, one sublane roll (row r <- r+j) and
    #    one lane roll (tap-j lane block -> lanes [0, out_dim)), then a plain add.
    #    Branches without tap j have zero weight columns, so no per-lane select needed.
    #    NOTE: the sublane roll wraps across batch boundaries (and from the end of the
    #    block back to row 0); correctness relies on the max-pool `valid` mask below
    #    excluding rows t > L - fs.  Re-verify if pooling/masking semantics change. --
    conv = y
    for j in range(1, max_fs):
        yj = pltpu.roll(y, shift=BL - j, axis=0)                     # rows:  r <- r + j
        yj = pltpu.roll(yj, shift=n_pad - j * out_dim, axis=1)       # lanes: c <- c + j*out_dim
        conv = conv + yj
    # lanes [0, out_dim) of `conv` now hold the conv outputs in torch.cat layout;
    # lanes >= out_dim contain junk and are masked / sliced away below.

    # -- per-lane valid-time mask for the global max-pool: t < L - fs(branch) + 1 --
    lane = lax.broadcasted_iota(jnp.int32, (1, n_pad), 1)
    fs_of_lane = jnp.full((1, n_pad), max_fs, jnp.int32)
    for i, fs in enumerate(kernel_sizes):
        sel = (lane >= i * nf) & (lane < (i + 1) * nf)
        fs_of_lane = jnp.where(sel, fs, fs_of_lane)

    t_of_row = lax.broadcasted_iota(jnp.int32, (BL, n_pad), 0) % L   # time index per row
    valid = t_of_row < (L - fs_of_lane + 1)                          # (BL, n_pad)

    # -- masked global max-pool over time: (tb*L, n_pad) -> (tb, L, n_pad) -> max(axis=1) --
    neg = jnp.finfo(jnp.float32).min
    masked = jnp.where(valid, conv, neg)
    pooled = jnp.max(masked.reshape(tb, L, n_pad), axis=1)           # (tb, n_pad)

    # -- bias + ReLU after the pool (bias constant over time, ReLU monotone => equivalent);
    #    zero the lane padding so the stored (tb, n_pad) block is clean. --
    result = jnp.maximum(pooled + bias_ref[...], 0.0)
    out_ref[...] = jnp.where(lane < out_dim, result, 0.0).astype(out_ref.dtype)


# ----------------------------- wrapper ------------------------------------------
def sentiment_cnn_forward(input_ids, fused_table, bias_packed,
                          *, kernel_sizes=KERNEL_SIZES, num_filters=NUM_FILTERS,
                          batch_block=BATCH_BLOCK):
    B, L = input_ids.shape
    v_pad, n_pad = fused_table.shape
    out_dim = len(kernel_sizes) * num_filters

    # pad batch so each grid step writes a full sublane-aligned (batch_block, n_pad) vreg
    # block; padded rows use token id 0 (padding_idx -> zero table row) and are sliced off.
    tb = batch_block
    b_pad = ((B + tb - 1) // tb) * tb
    ids = jnp.zeros((b_pad, L), jnp.int32).at[:B].set(input_ids.astype(jnp.int32))
    ids2d = ids.reshape(b_pad * L, 1)

    kernel = functools.partial(_sentiment_cnn_kernel, tb, L, num_filters,
                               tuple(kernel_sizes), v_pad, n_pad)

    flops = 2 * b_pad * L * v_pad * n_pad
    bytes_accessed = (ids2d.size * 4
                      + fused_table.size * fused_table.dtype.itemsize
                      + bias_packed.size * 4
                      + b_pad * n_pad * 4)

    out = pl.pallas_call(
        kernel,
        out_shape=jax.ShapeDtypeStruct((b_pad, n_pad), jnp.float32),
        grid=(b_pad // tb,),
        in_specs=[
            pl.BlockSpec((tb * L, 1), lambda b: (b, 0)),         # ids, batch-tiled
            pl.BlockSpec((v_pad, n_pad), lambda b: (0, 0)),      # fused table, resident
            pl.BlockSpec((1, n_pad), lambda b: (0, 0)),          # bias, resident
        ],
        out_specs=pl.BlockSpec((tb, n_pad), lambda b: (b, 0)),
        compiler_params=pltpu.CompilerParams(
            dimension_semantics=("parallel",)),                  # batch grid -> 2nd TC on v7x
        cost_estimate=pl.CostEstimate(flops=flops, transcendentals=0,
                                      bytes_accessed=bytes_accessed),
    )(ids2d, fused_table, bias_packed)
    # strip batch / lane padding -> (B, len(kernel_sizes) * num_filters)
    return out[:B, :out_dim]
    # TODO(synk): at production batch sizes, re-derive the batch block size against v7x's
    #             64 MiB VMEM (tiles tuned for v5e/v6e's 128 MiB will not carry over).


# ----------------------------- parameter init / packing -------------------------
def init_params(key):
    k_emb, *k_convs = jax.random.split(key, 1 + 2 * len(KERNEL_SIZES))

    # nn.Embedding: N(0, 1), padding_idx=0 row zeroed.
    emb = jax.random.normal(k_emb, (VOCAB_SIZE, EMBEDDING_DIM), jnp.float32)
    emb = emb.at[0].set(0.0)

    w_torch_all, b_all = [], []
    for i, fs in enumerate(KERNEL_SIZES):
        kw, kb = k_convs[2 * i], k_convs[2 * i + 1]
        bound = 1.0 / (EMBEDDING_DIM * fs) ** 0.5      # PyTorch Conv1d default init bound
        w_torch_all.append(jax.random.uniform(kw, (NUM_FILTERS, EMBEDDING_DIM, fs),
                                              jnp.float32, -bound, bound))
        b_all.append(jax.random.uniform(kb, (NUM_FILTERS,), jnp.float32, -bound, bound))
    return emb, w_torch_all, b_all


def pack_params(emb, w_torch_all, b_all, table_dtype=jnp.float32):
    emb_padded = jnp.zeros((V_PAD, EMBEDDING_DIM), jnp.float32).at[:VOCAB_SIZE].set(emb)

    # tap-major-outer / branch-major-inner stacked conv weights:
    #   column (j*OUT_DIM + i*NUM_FILTERS + f) = W_i[f, :, j]  (zero when j >= fs_i)
    # => the tap-0 lane block [0, OUT_DIM) is already the final torch.cat layout.
    w_stacked = jnp.zeros((EMBEDDING_DIM, N_PAD), jnp.float32)
    bias_packed = jnp.zeros((1, N_PAD), jnp.float32)
    for i, (fs, w_t, b) in enumerate(zip(KERNEL_SIZES, w_torch_all, b_all)):
        for j in range(fs):
            c0 = j * OUT_DIM + i * NUM_FILTERS
            w_stacked = w_stacked.at[:, c0:c0 + NUM_FILTERS].set(w_t[:, :, j].T)
        bias_packed = bias_packed.at[0, i * NUM_FILTERS:(i + 1) * NUM_FILTERS].set(b)

    # fold embedding + conv weights into one (V_PAD, N_PAD) table (single K=128 MXU matmul
    # inside the kernel).  # TODO(synk): for a large vocab, keep them separate and switch to
    # a PrefetchScalarGridSpec row-gather / DMA gather instead of the one-hot matmul.
    fused_table = jnp.dot(emb_padded, w_stacked,
                          precision=lax.Precision.HIGHEST).astype(table_dtype)
    return fused_table, bias_packed


# ----------------------------- reference (pure JAX) ------------------------------
def reference_forward(input_ids, emb, w_torch_all, b_all):
    x = jnp.take(emb, input_ids, axis=0)                       # (B, L, E)
    pooled_all = []
    for w_t, b in zip(w_torch_all, b_all):
        nf, _, fs = w_t.shape
        l_out = x.shape[1] - fs + 1
        acc = jnp.zeros((x.shape[0], l_out, nf), jnp.float32)
        for k in range(fs):
            acc += jnp.einsum('ble,fe->blf', x[:, k:k + l_out, :], w_t[:, :, k],
                              precision=lax.Precision.HIGHEST)
        acc = jnp.maximum(acc + b[None, None, :], 0.0)
        pooled_all.append(jnp.max(acc, axis=1))
    return jnp.concatenate(pooled_all, axis=1)


# ----------------------------- main ----------------------------------------------
if __name__ == "__main__":
    key = jax.random.PRNGKey(0)
    k_params, k_ids = jax.random.split(key)

    emb, w_torch_all, b_all = init_params(k_params)
    input_ids = jax.random.randint(k_ids, (BATCH, SEQ_LEN), 0, VOCAB_SIZE, jnp.int32)

    ref = jax.block_until_ready(reference_forward(input_ids, emb, w_torch_all, b_all))
    fwd = jax.jit(sentiment_cnn_forward)

    # f32 operands (tight check against the reference)
    table_f32, bias_packed = pack_params(emb, w_torch_all, b_all, jnp.float32)
    out_f32 = jax.block_until_ready(fwd(input_ids, table_f32, bias_packed))
    assert out_f32.shape == (BATCH, OUT_DIM)
    assert jnp.allclose(out_f32, ref, atol=1e-4, rtol=1e-4), (
        float(jnp.max(jnp.abs(out_f32 - ref))))

    # bf16 MXU operands (native rate on v6e/v7x; f32 accumulation and f32 VPU tail kept)
    table_bf16, _ = pack_params(emb, w_torch_all, b_all, jnp.bfloat16)
    out_bf16 = jax.block_until_ready(fwd(input_ids, table_bf16, bias_packed))
    assert jnp.allclose(out_bf16, ref, atol=2e-2, rtol=2e-2), (
        float(jnp.max(jnp.abs(out_bf16 - ref))))

    print("KERNEL_OK")
</pallas_src>

<mosaic_0001>
module attributes {stable_mosaic.version = 11 : i64} {
  func.func @_sentiment_cnn_kernel(%arg0: i32, %arg1: memref<128x1xi32, #tpu.memory_space<vmem>>, %arg2: memref<128x128xf32, #tpu.memory_space<vmem>>, %arg3: memref<1x128xf32, #tpu.memory_space<vmem>>, %arg4: memref<8x128xf32, #tpu.memory_space<vmem>>) attributes {dimension_semantics = [#tpu.dimension_semantics<parallel>], iteration_bounds = array<i64: 1>, scalar_prefetch = 0 : i64, scratch_operands = 0 : i64, tpu.core_type = #tpu.core_type<tc>, window_params = [{transform_indices = @transform_0, window_bounds = array<i64: 128, 1>}, {pipeline_mode = #tpu.pipeline_mode<synchronous>, transform_indices = @transform_1, window_bounds = array<i64: 128, 128>}, {pipeline_mode = #tpu.pipeline_mode<synchronous>, transform_indices = @transform_2, window_bounds = array<i64: 1, 128>}, {transform_indices = @transform_3, window_bounds = array<i64: 8, 128>}]} {
    %c0 = arith.constant 0 : index
    %c0_0 = arith.constant 0 : index
    %0 = vector.load %arg1[%c0, %c0_0] : memref<128x1xi32, #tpu.memory_space<vmem>>, vector<128x1xi32>
    %1 = tpu.iota {dimensions = array<i32: 1>} : vector<128x128xi32>
    %2 = vector.broadcast %0 : vector<128x1xi32> to vector<128x128xi32>
    %3 = arith.cmpi eq, %1, %2 : vector<128x128xi32>
    %4 = arith.extui %3 : vector<128x128xi1> to vector<128x128xi32>
    %5 = arith.sitofp %4 : vector<128x128xi32> to vector<128x128xf32>
    %c0_1 = arith.constant 0 : index
    %c0_2 = arith.constant 0 : index
    %6 = vector.load %arg2[%c0_1, %c0_2] : memref<128x128xf32, #tpu.memory_space<vmem>>, vector<128x128xf32>
    %cst = arith.constant dense<0.000000e+00> : vector<128x128xf32>
    %7 = tpu.matmul %5, %6, %cst {dimension_numbers = #tpu.dot_dimension_numbers<[1], [0], [0], [1], [0, 0, 1, 1], [], []>} : vector<128x128xf32>, vector<128x128xf32>, vector<128x128xf32> -> vector<128x128xf32>
    %c127_i32 = arith.constant 127 : i32
    %8 = tpu.dynamic_rotate %7 by %c127_i32 dim 0 : vector<128x128xf32>, i32 -> vector<128x128xf32>
    %c104_i32 = arith.constant 104 : i32
    %9 = tpu.dynamic_rotate %8 by %c104_i32 dim 1 : vector<128x128xf32>, i32 -> vector<128x128xf32>
    %10 = arith.addf %7, %9 : vector<128x128xf32>
    %c126_i32 = arith.constant 126 : i32
    %11 = tpu.dynamic_rotate %7 by %c126_i32 dim 0 : vector<128x128xf32>, i32 -> vector<128x128xf32>
    %c80_i32 = arith.constant 80 : i32
    %12 = tpu.dynamic_rotate %11 by %c80_i32 dim 1 : vector<128x128xf32>, i32 -> vector<128x128xf32>
    %13 = arith.addf %10, %12 : vector<128x128xf32>
    %c125_i32 = arith.constant 125 : i32
    %14 = tpu.dynamic_rotate %7 by %c125_i32 dim 0 : vector<128x128xf32>, i32 -> vector<128x128xf32>
    %c56_i32 = arith.constant 56 : i32
    %15 = tpu.dynamic_rotate %14 by %c56_i32 dim 1 : vector<128x128xf32>, i32 -> vector<128x128xf32>
    %16 = arith.addf %13, %15 : vector<128x128xf32>
    %c124_i32 = arith.constant 124 : i32
    %17 = tpu.dynamic_rotate %7 by %c124_i32 dim 0 : vector<128x128xf32>, i32 -> vector<128x128xf32>
    %c32_i32 = arith.constant 32 : i32
    %18 = tpu.dynamic_rotate %17 by %c32_i32 dim 1 : vector<128x128xf32>, i32 -> vector<128x128xf32>
    %19 = arith.addf %16, %18 : vector<128x128xf32>
    %20 = tpu.iota {dimensions = array<i32: 1>} : vector<1x128xi32>
    %c5_i32 = arith.constant 5 : i32
    %21 = vector.broadcast %c5_i32 : i32 to vector<1x128xi32>
    %c0_i32 = arith.constant 0 : i32
    %22 = vector.broadcast %c0_i32 : i32 to vector<1x128xi32>
    %23 = arith.cmpi sge, %20, %22 : vector<1x128xi32>
    %c8_i32 = arith.constant 8 : i32
    %24 = vector.broadcast %c8_i32 : i32 to vector<1x128xi32>
    %25 = arith.cmpi slt, %20, %24 : vector<1x128xi32>
    %26 = arith.andi %23, %25 : vector<1x128xi1>
    %c3_i32 = arith.constant 3 : i32
    %27 = vector.broadcast %c3_i32 : i32 to vector<1x128xi32>
    %28 = arith.select %26, %27, %21 : vector<1x128xi1>, vector<1x128xi32>
    %c8_i32_3 = arith.constant 8 : i32
    %29 = vector.broadcast %c8_i32_3 : i32 to vector<1x128xi32>
    %30 = arith.cmpi sge, %20, %29 : vector<1x128xi32>
    %c16_i32 = arith.constant 16 : i32
    %31 = vector.broadcast %c16_i32 : i32 to vector<1x128xi32>
    %32 = arith.cmpi slt, %20, %31 : vector<1x128xi32>
    %33 = arith.andi %30, %32 : vector<1x128xi1>
    %c4_i32 = arith.constant 4 : i32
    %34 = vector.broadcast %c4_i32 : i32 to vector<1x128xi32>
    %35 = arith.select %33, %34, %28 : vector<1x128xi1>, vector<1x128xi32>
    %c16_i32_4 = arith.constant 16 : i32
    %36 = vector.broadcast %c16_i32_4 : i32 to vector<1x128xi32>
    %37 = arith.cmpi sge, %20, %36 : vector<1x128xi32>
    %c24_i32 = arith.constant 24 : i32
    %38 = vector.broadcast %c24_i32 : i32 to vector<1x128xi32>
    %39 = arith.cmpi slt, %20, %38 : vector<1x128xi32>
    %40 = arith.andi %37, %39 : vector<1x128xi1>
    %c5_i32_5 = arith.constant 5 : i32
    %41 = vector.broadcast %c5_i32_5 : i32 to vector<1x128xi32>
    %42 = arith.select %40, %41, %35 : vector<1x128xi1>, vector<1x128xi32>
    %43 = tpu.iota {dimensions = array<i32: 0>} : vector<128x128xi32>
    %c16_i32_6 = arith.constant 16 : i32
    %c0_i32_7 = arith.constant 0 : i32
    %44 = arith.cmpi eq, %c16_i32_6, %c0_i32_7 : i32
    %c1_i32 = arith.constant 1 : i32
    %45 = arith.select %44, %c1_i32, %c16_i32_6 : i32
    %46 = vector.broadcast %45 : i32 to vector<128x128xi32>
    %47 = arith.remsi %43, %46 : vector<128x128xi32>
    %c0_i32_8 = arith.constant 0 : i32
    %48 = vector.broadcast %c0_i32_8 : i32 to vector<128x128xi32>
    %49 = arith.cmpi ne, %47, %48 : vector<128x128xi32>
    %c0_i32_9 = arith.constant 0 : i32
    %50 = vector.broadcast %c0_i32_9 : i32 to vector<128x128xi32>
    %51 = arith.cmpi slt, %47, %50 : vector<128x128xi32>
    %c0_i32_10 = arith.constant 0 : i32
    %52 = arith.cmpi slt, %45, %c0_i32_10 : i32
    %53 = vector.broadcast %52 : i1 to vector<128x128xi1>
    %54 = vector.broadcast %53 : vector<128x128xi1> to vector<128x128xi1>
    %55 = arith.xori %51, %54 : vector<128x128xi1>
    %56 = arith.andi %55, %49 : vector<128x128xi1>
    %57 = vector.broadcast %45 : i32 to vector<128x128xi32>
    %58 = arith.addi %47, %57 : vector<128x128xi32>
    %59 = arith.select %56, %58, %47 : vector<128x128xi1>, vector<128x128xi32>
    %c16_i32_11 = arith.constant 16 : i32
    %60 = vector.broadcast %c16_i32_11 : i32 to vector<1x128xi32>
    %61 = arith.subi %60, %42 : vector<1x128xi32>
    %c1_i32_12 = arith.constant 1 : i32
    %62 = vector.broadcast %c1_i32_12 : i32 to vector<1x128xi32>
    %63 = arith.addi %61, %62 : vector<1x128xi32>
    %64 = vector.broadcast %63 : vector<1x128xi32> to vector<128x128xi32>
    %65 = arith.cmpi slt, %59, %64 : vector<128x128xi32>
    %cst_13 = arith.constant -3.40282347E+38 : f32
    %66 = vector.broadcast %cst_13 : f32 to vector<128x128xf32>
    %67 = arith.select %65, %19, %66 : vector<128x128xi1>, vector<128x128xf32>
    %68 = vector.shape_cast %67 : vector<128x128xf32> to vector<8x16x128xf32>
    %cst_14 = arith.constant dense<0xFF800000> : vector<8x128xf32>
    %69 = vector.multi_reduction <maximumf>, %68, %cst_14 [1] : vector<8x16x128xf32> to vector<8x128xf32>
    %c0_15 = arith.constant 0 : index
    %c0_16 = arith.constant 0 : index
    %70 = vector.load %arg3[%c0_15, %c0_16] : memref<1x128xf32, #tpu.memory_space<vmem>>, vector<1x128xf32>
    %71 = vector.broadcast %70 : vector<1x128xf32> to vector<8x128xf32>
    %72 = arith.addf %69, %71 : vector<8x128xf32>
    %cst_17 = arith.constant 0.000000e+00 : f32
    %73 = vector.broadcast %cst_17 : f32 to vector<8x128xf32>
    %74 = arith.maximumf %72, %73 : vector<8x128xf32>
    %c24_i32_18 = arith.constant 24 : i32
    %75 = vector.broadcast %c24_i32_18 : i32 to vector<1x128xi32>
    %76 = arith.cmpi slt, %20, %75 : vector<1x128xi32>
    %cst_19 = arith.constant 0.000000e+00 : f32
    %77 = vector.shape_cast %76 : vector<1x128xi1> to vector<1x128xi1>
    %78 = vector.broadcast %77 : vector<1x128xi1> to vector<8x128xi1>
    %79 = vector.broadcast %cst_19 : f32 to vector<8x128xf32>
    %80 = arith.select %78, %74, %79 : vector<8x128xi1>, vector<8x128xf32>
    %c0_20 = arith.constant 0 : index
    %c0_21 = arith.constant 0 : index
    %81 = vector.load %arg4[%c0_20, %c0_21] : memref<8x128xf32, #tpu.memory_space<vmem>>, vector<8x128xf32>
    tpu.vector_store %arg4[%c0_20, %c0_21], %80 {strides = array<i32>} : memref<8x128xf32, #tpu.memory_space<vmem>>, vector<8x128xf32>,
    return
  }
  func.func @transform_0(%arg0: i32) -> (i32, i32) {
    %c0_i32 = arith.constant 0 : i32
    %c0_i32_0 = arith.constant 0 : i32
    return %arg0, %c0_i32 : i32, i32
  }
  func.func @transform_1(%arg0: i32) -> (i32, i32) {
    %c0_i32 = arith.constant 0 : i32
    %c0_i32_0 = arith.constant 0 : i32
    %c0_i32_1 = arith.constant 0 : i32
    return %c0_i32, %c0_i32_0 : i32, i32
  }
  func.func @transform_2(%arg0: i32) -> (i32, i32) {
    %c0_i32 = arith.constant 0 : i32
    %c0_i32_0 = arith.constant 0 : i32
    %c0_i32_1 = arith.constant 0 : i32
    return %c0_i32, %c0_i32_0 : i32, i32
  }
  func.func @transform_3(%arg0: i32) -> (i32, i32) {
    %c0_i32 = arith.constant 0 : i32
    %c0_i32_0 = arith.constant 0 : i32
    return %arg0, %c0_i32 : i32, i32
  }
}

</mosaic_0001>

<llo_original>
// kernel: sentiment_cnn_forward.1
$region0: #{sentiment_cnn_forward.1}
  #allocation0 [shape = 'u32[]', space=smem, size = 0x4, offset = 0x4, fixed_abs, tag = 'smem constant byte address 0x4 - core index']
  #allocation1 [shape = 'u32[144,128]{1,0:T(1,128)}', space=vmem, size = 0x12000, scoped, tag = 'internal scratch']
  %s0 = inlined_call_operand.vmem [shape: s32[128,1], index: 0, kind: input, shape index: {}]
  %s1 = inlined_call_operand.vmem [shape: f32[128,128], index: 1, kind: input, shape index: {}]
  %s2 = inlined_call_operand.vmem [shape: f32[1,128], index: 2, kind: input, shape index: {}]
  %s3 = inlined_call_operand.vmem [shape: f32[8,128], index: 3, kind: output, shape index: {}]
  %s4 = sld [smem:[#allocation0]]
  $region22: #{sentiment_cnn_forward.1} parent=0
    _
  %s6 = ssub.s32 1, %s4
  %s7 = scalar_select 0, %s6, %s4
  // Predicated region
  $region2: #{sentiment_cnn_forward.1} parent=0 // pred_check
    _
  $region3: #{sentiment_cnn_forward.1} parent=0 // pred_check_branch
    %9 = sbr.rel (0) target = $region5
  $region4: #{sentiment_cnn_forward.1} parent=0 // pred_region
    _
  $region5: #{sentiment_cnn_forward.1} parent=0 // pred_fallthru
    _
  // Predicated region
  $region6: #{sentiment_cnn_forward.1} parent=0 // pred_check
    _
  $region7: #{sentiment_cnn_forward.1} parent=0 // pred_check_branch
    %11 = sbr.rel (0) target = $region9
  $region8: #{sentiment_cnn_forward.1} parent=0 // pred_region
    _
  $region9: #{sentiment_cnn_forward.1} parent=0 // pred_fallthru
    _
  // Predicated region
  $region10: #{sentiment_cnn_forward.1} parent=0 // pred_check
    _
  $region11: #{sentiment_cnn_forward.1} parent=0 // pred_check_branch
    %13 = sbr.rel (0) target = $region13
  $region12: #{sentiment_cnn_forward.1} parent=0 // pred_region
    _
  $region13: #{sentiment_cnn_forward.1} parent=0 // pred_fallthru
    _
  %v14 = vld [vmem:[%s0] sm:$0xff]
  %v15 = vld [vmem:[%s0 + $0x8] sm:$0xff]
  %v16 = vld [vmem:[%s0 + $0x10] sm:$0xff]
  %v17 = vld [vmem:[%s0 + $0x18] sm:$0xff]
  %v18 = vld [vmem:[%s0 + $0x20] sm:$0xff]
  %v19 = vld [vmem:[%s0 + $0x28] sm:$0xff]
  %v20 = vld [vmem:[%s0 + $0x30] sm:$0xff]
  %v21 = vld [vmem:[%s0 + $0x38] sm:$0xff]
  %v22 = vld [vmem:[%s0 + $0x40] sm:$0xff]
  %v23 = vld [vmem:[%s0 + $0x48] sm:$0xff]
  %v24 = vld [vmem:[%s0 + $0x50] sm:$0xff]
  %v25 = vld [vmem:[%s0 + $0x58] sm:$0xff]
  %v26 = vld [vmem:[%s0 + $0x60] sm:$0xff]
  %v27 = vld [vmem:[%s0 + $0x68] sm:$0xff]
  %v28 = vld [vmem:[%s0 + $0x70] sm:$0xff]
  %v29 = vld [vmem:[%s0 + $0x78] sm:$0xff]
  %v30 = vlaneseq
  %v31 = vand.u32 %v30, 127
  %32 = vset.pattern.permute.xlu0 0
  %33 = vperm.xlu0 %32, %v14
  %v34 = vpop.permute.xlu0 %33
  %35 = vset.pattern.permute.xlu0 0
  %36 = vperm.xlu0 %35, %v15
  %v37 = vpop.permute.xlu0 %36
  %38 = vset.pattern.permute.xlu0 0
  %39 = vperm.xlu0 %38, %v16
  %v40 = vpop.permute.xlu0 %39
  %41 = vset.pattern.permute.xlu0 0
  %42 = vperm.xlu0 %41, %v17
  %v43 = vpop.permute.xlu0 %42
  %44 = vset.pattern.permute.xlu0 0
  %45 = vperm.xlu0 %44, %v18
  %v46 = vpop.permute.xlu0 %45
  %47 = vset.pattern.permute.xlu0 0
  %48 = vperm.xlu0 %47, %v19
  %v49 = vpop.permute.xlu0 %48
  %50 = vset.pattern.permute.xlu0 0
  %51 = vperm.xlu0 %50, %v20
  %v52 = vpop.permute.xlu0 %51
  %53 = vset.pattern.permute.xlu0 0
  %54 = vperm.xlu0 %53, %v21
  %v55 = vpop.permute.xlu0 %54
  %56 = vset.pattern.permute.xlu0 0
  %57 = vperm.xlu0 %56, %v22
  %v58 = vpop.permute.xlu0 %57
  %59 = vset.pattern.permute.xlu0 0
  %60 = vperm.xlu0 %59, %v23
  %v61 = vpop.permute.xlu0 %60
  %62 = vset.pattern.permute.xlu0 0
  %63 = vperm.xlu0 %62, %v24
  %v64 = vpop.permute.xlu0 %63
  %65 = vset.pattern.permute.xlu0 0
  %66 = vperm.xlu0 %65, %v25
  %v67 = vpop.permute.xlu0 %66
  %68 = vset.pattern.permute.xlu0 0
  %69 = vperm.xlu0 %68, %v26
  %v70 = vpop.permute.xlu0 %69
  %71 = vset.pattern.permute.xlu0 0
  %72 = vperm.xlu0 %71, %v27
  %v73 = vpop.permute.xlu0 %72
  %74 = vset.pattern.permute.xlu0 0
  %75 = vperm.xlu0 %74, %v28
  %v76 = vpop.permute.xlu0 %75
  %77 = vset.pattern.permute.xlu0 0
  %78 = vperm.xlu0 %77, %v29
  %v79 = vpop.permute.xlu0 %78
  %vm80 = vcmp.eq.s32.totalorder %v31, %v34
  %vm81 = vcmp.eq.s32.totalorder %v31, %v37
  %vm82 = vcmp.eq.s32.totalorder %v31, %v40
  %vm83 = vcmp.eq.s32.totalorder %v31, %v43
  %vm84 = vcmp.eq.s32.totalorder %v31, %v46
  %vm85 = vcmp.eq.s32.totalorder %v31, %v49
  %vm86 = vcmp.eq.s32.totalorder %v31, %v52
  %vm87 = vcmp.eq.s32.totalorder %v31, %v55
  %vm88 = vcmp.eq.s32.totalorder %v31, %v58
  %vm89 = vcmp.eq.s32.totalorder %v31, %v61
  %vm90 = vcmp.eq.s32.totalorder %v31, %v64
  %vm91 = vcmp.eq.s32.totalorder %v31, %v67
  %vm92 = vcmp.eq.s32.totalorder %v31, %v70
  %vm93 = vcmp.eq.s32.totalorder %v31, %v73
  %vm94 = vcmp.eq.s32.totalorder %v31, %v76
  %vm95 = vcmp.eq.s32.totalorder %v31, %v79
  %v96 = vsel %vm80, 1, 0
  %v97 = vsel %vm81, 1, 0
  %v98 = vsel %vm82, 1, 0
  %v99 = vsel %vm83, 1, 0
  %v100 = vsel %vm84, 1, 0
  %v101 = vsel %vm85, 1, 0
  %v102 = vsel %vm86, 1, 0
  %v103 = vsel %vm87, 1, 0
  %v104 = vsel %vm88, 1, 0
  %v105 = vsel %vm89, 1, 0
  %v106 = vsel %vm90, 1, 0
  %v107 = vsel %vm91, 1, 0
  %v108 = vsel %vm92, 1, 0
  %v109 = vsel %vm93, 1, 0
  %v110 = vsel %vm94, 1, 0
  %v111 = vsel %vm95, 1, 0
  %v112 = vcvt.s32.f32 %v96
  %v113 = vcvt.s32.f32 %v97
  %v114 = vcvt.s32.f32 %v98
  %v115 = vcvt.s32.f32 %v99
  %v116 = vcvt.s32.f32 %v100
  %v117 = vcvt.s32.f32 %v101
  %v118 = vcvt.s32.f32 %v102
  %v119 = vcvt.s32.f32 %v103
  %v120 = vcvt.s32.f32 %v104
  %v121 = vcvt.s32.f32 %v105
  %v122 = vcvt.s32.f32 %v106
  %v123 = vcvt.s32.f32 %v107
  %v124 = vcvt.s32.f32 %v108
  %v125 = vcvt.s32.f32 %v109
  %v126 = vcvt.s32.f32 %v110
  %v127 = vcvt.s32.f32 %v111
  %v128 = vld [vmem:[%s1] sm:$0xff]
  %v129 = vld [vmem:[%s1 + $0x8] sm:$0xff]
  %v130 = vld [vmem:[%s1 + $0x10] sm:$0xff]
  %v131 = vld [vmem:[%s1 + $0x18] sm:$0xff]
  %v132 = vld [vmem:[%s1 + $0x20] sm:$0xff]
  %v133 = vld [vmem:[%s1 + $0x28] sm:$0xff]
  %v134 = vld [vmem:[%s1 + $0x30] sm:$0xff]
  %v135 = vld [vmem:[%s1 + $0x38] sm:$0xff]
  %v136 = vld [vmem:[%s1 + $0x40] sm:$0xff]
  %v137 = vld [vmem:[%s1 + $0x48] sm:$0xff]
  %v138 = vld [vmem:[%s1 + $0x50] sm:$0xff]
  %v139 = vld [vmem:[%s1 + $0x58] sm:$0xff]
  %v140 = vld [vmem:[%s1 + $0x60] sm:$0xff]
  %v141 = vld [vmem:[%s1 + $0x68] sm:$0xff]
  %v142 = vld [vmem:[%s1 + $0x70] sm:$0xff]
  %v143 = vld [vmem:[%s1 + $0x78] sm:$0xff]
  %144 = vmatprep.subr.mxu0 0.0
  %145 = vmatpush1.msra.mxu0 %v128
  %146 = vmatprep.subr.mxu0 0.0
  %147 = vmatpush1.msra.mxu0 %v129
  %148 = vmatprep.subr.mxu0 0.0
  %149 = vmatpush1.msra.mxu0 %v130
  %150 = vmatprep.subr.mxu0 0.0
  %151 = vmatpush1.msra.mxu0 %v131
  %152 = vmatprep.subr.mxu0 0.0
  %153 = vmatpush1.msra.mxu0 %v132
  %154 = vmatprep.subr.mxu0 0.0
  %155 = vmatpush1.msra.mxu0 %v133
  %156 = vmatprep.subr.mxu0 0.0
  %157 = vmatpush1.msra.mxu0 %v134
  %158 = vmatprep.subr.mxu0 0.0
  %159 = vmatpush1.msra.mxu0 %v135
  %160 = vmatprep.subr.mxu0 0.0
  %161 = vmatpush1.msra.mxu0 %v136
  %162 = vmatprep.subr.mxu0 0.0
  %163 = vmatpush1.msra.mxu0 %v137
  %164 = vmatprep.subr.mxu0 0.0
  %165 = vmatpush1.msra.mxu0 %v138
  %166 = vmatprep.subr.mxu0 0.0
  %167 = vmatpush1.msra.mxu0 %v139
  %168 = vmatprep.subr.mxu0 0.0
  %169 = vmatpush1.msra.mxu0 %v140
  %170 = vmatprep.subr.mxu0 0.0
  %171 = vmatpush1.msra.mxu0 %v141
  %172 = vmatprep.subr.mxu0 0.0
  %173 = vmatpush1.msra.mxu0 %v142
  %174 = vmatprep.subr.mxu0 0.0
  %175 = vmatpush1.msra.mxu0 %v143
  %176 = vmatprep.subr.mxu0 0.0
  %177 = vmatpush1.msra.mxu0 0.0
  %178 = vmatprep.subr.mxu0 0.0
  %179 = vmatpush1.msra.mxu0 0.0
  %180 = vmatprep.subr.mxu0 0.0
  %181 = vmatpush1.msra.mxu0 0.0
  %182 = vmatprep.subr.mxu0 0.0
  %183 = vmatpush1.msra.mxu0 0.0
  %184 = vmatprep.subr.mxu0 0.0
  %185 = vmatpush1.msra.mxu0 0.0
  %186 = vmatprep.subr.mxu0 0.0
  %187 = vmatpush1.msra.mxu0 0.0
  %188 = vmatprep.subr.mxu0 0.0
  %189 = vmatpush1.msra.mxu0 0.0
  %190 = vmatprep.subr.mxu0 0.0
  %191 = vmatpush1.msra.mxu0 0.0
  %192 = vmatprep.subr.mxu0 0.0
  %193 = vmatpush1.msra.mxu0 0.0
  %194 = vmatprep.subr.mxu0 0.0
  %195 = vmatpush1.msra.mxu0 0.0
  %196 = vmatprep.subr.mxu0 0.0
  %197 = vmatpush1.msra.mxu0 0.0
  %198 = vmatprep.subr.mxu0 0.0
  %199 = vmatpush1.msra.mxu0 0.0
  %200 = vmatprep.subr.mxu0 0.0
  %201 = vmatpush1.msra.mxu0 0.0
  %202 = vmatprep.subr.mxu0 0.0
  %203 = vmatpush1.msra.mxu0 0.0
  %204 = vmatprep.subr.mxu0 0.0
  %205 = vmatpush1.msra.mxu0 0.0
  %206 = vmatprep.subr.mxu0 0.0
  %207 = vmatpush1.msra.mxu0 0.0
  %208 = vmatprep.mubr.f32.mxu0 0.0
  %209 = vmatmul.mubr.f32.gmra.mrb[0].mxu0 %v112
  %v210 = vpop.f32.mrb[0].mxu0
  %v211 = vadd.f32 0.0, %v210
  %v212 = vpop.f32.mrb[0].mxu0
  %213 = vmatprep.mubr.f32.mxu0 0.0
  %214 = vmatmul.mubr.f32.gmra.mrb[0].mxu0 %v113
  %v215 = vpop.f32.mrb[0].mxu0
  %v216 = vadd.f32 0.0, %v215
  %v217 = vpop.f32.mrb[0].mxu0
  %218 = vmatprep.mubr.f32.mxu0 0.0
  %219 = vmatmul.mubr.f32.gmra.mrb[0].mxu0 %v114
  %v220 = vpop.f32.mrb[0].mxu0
  %v221 = vadd.f32 0.0, %v220
  %v222 = vpop.f32.mrb[0].mxu0
  %223 = vmatprep.mubr.f32.mxu0 0.0
  %224 = vmatmul.mubr.f32.gmra.mrb[0].mxu0 %v115
  %v225 = vpop.f32.mrb[0].mxu0
  %v226 = vadd.f32 0.0, %v225
  %v227 = vpop.f32.mrb[0].mxu0
  %228 = vmatprep.mubr.f32.mxu0 0.0
  %229 = vmatmul.mubr.f32.gmra.mrb[0].mxu0 %v116
  %v230 = vpop.f32.mrb[0].mxu0
  %v231 = vadd.f32 0.0, %v230
  %v232 = vpop.f32.mrb[0].mxu0
  %233 = vmatprep.mubr.f32.mxu0 0.0
  %234 = vmatmul.mubr.f32.gmra.mrb[0].mxu0 %v117
  %v235 = vpop.f32.mrb[0].mxu0
  %v236 = vadd.f32 0.0, %v235
  %v237 = vpop.f32.mrb[0].mxu0
  %238 = vmatprep.mubr.f32.mxu0 0.0
  %239 = vmatmul.mubr.f32.gmra.mrb[0].mxu0 %v118
  %v240 = vpop.f32.mrb[0].mxu0
  %v241 = vadd.f32 0.0, %v240
  %v242 = vpop.f32.mrb[0].mxu0
  %243 = vmatprep.mubr.f32.mxu0 0.0
  %244 = vmatmul.mubr.f32.gmra.mrb[0].mxu0 %v119
  %v245 = vpop.f32.mrb[0].mxu0
  %v246 = vadd.f32 0.0, %v245
  %v247 = vpop.f32.mrb[0].mxu0
  %248 = vmatprep.mubr.f32.mxu0 0.0
  %249 = vmatmul.mubr.f32.gmra.mrb[0].mxu0 %v120
  %v250 = vpop.f32.mrb[0].mxu0
  %v251 = vadd.f32 0.0, %v250
  %v252 = vpop.f32.mrb[0].mxu0
  %253 = vmatprep.mubr.f32.mxu0 0.0
  %254 = vmatmul.mubr.f32.gmra.mrb[0].mxu0 %v121
  %v255 = vpop.f32.mrb[0].mxu0
  %v256 = vadd.f32 0.0, %v255
  %v257 = vpop.f32.mrb[0].mxu0
  %258 = vmatprep.mubr.f32.mxu0 0.0
  %259 = vmatmul.mubr.f32.gmra.mrb[0].mxu0 %v122
  %v260 = vpop.f32.mrb[0].mxu0
  %v261 = vadd.f32 0.0, %v260
  %v262 = vpop.f32.mrb[0].mxu0
  %263 = vmatprep.mubr.f32.mxu0 0.0
  %264 = vmatmul.mubr.f32.gmra.mrb[0].mxu0 %v123
  %v265 = vpop.f32.mrb[0].mxu0
  %v266 = vadd.f32 0.0, %v265
  %v267 = vpop.f32.mrb[0].mxu0
  %268 = vmatprep.mubr.f32.mxu0 0.0
  %269 = vmatmul.mubr.f32.gmra.mrb[0].mxu0 %v124
  %v270 = vpop.f32.mrb[0].mxu0
  %v271 = vadd.f32 0.0, %v270
  %v272 = vpop.f32.mrb[0].mxu0
  %273 = vmatprep.mubr.f32.mxu0 0.0
  %274 = vmatmul.mubr.f32.gmra.mrb[0].mxu0 %v125
  %v275 = vpop.f32.mrb[0].mxu0
  %v276 = vadd.f32 0.0, %v275
  %v277 = vpop.f32.mrb[0].mxu0
  %278 = vmatprep.mubr.f32.mxu0 0.0
  %279 = vmatmul.mubr.f32.gmra.mrb[0].mxu0 %v126
  %v280 = vpop.f32.mrb[0].mxu0
  %v281 = vadd.f32 0.0, %v280
  %v282 = vpop.f32.mrb[0].mxu0
  %283 = vmatprep.mubr.f32.mxu0 0.0
  %284 = vmatmul.mubr.f32.gmra.mrb[0].mxu0 %v127
  %v285 = vpop.f32.mrb[0].mxu0
  %v286 = vadd.f32 0.0, %v285
  %v287 = vpop.f32.mrb[0].mxu0
  %288 = vdwg.mxu0
  %v289 = vrot.slane %v211, 1
  %v290 = vrot.slane %v216, 1
  %v291 = vrot.slane %v221, 1
  %v292 = vrot.slane %v226, 1
  %v293 = vrot.slane %v231, 1
  %v294 = vrot.slane %v236, 1
  %v295 = vrot.slane %v241, 1
  %v296 = vrot.slane %v246, 1
  %v297 = vrot.slane %v251, 1
  %v298 = vrot.slane %v256, 1
  %v299 = vrot.slane %v261, 1
  %v300 = vrot.slane %v266, 1
  %v301 = vrot.slane %v271, 1
  %v302 = vrot.slane %v276, 1
  %v303 = vrot.slane %v281, 1
  %v304 = vrot.slane %v286, 1
  %v305 = vlaneseq
  %v306 = vshrl.u32 %v305, 7
  %vm307 = vcmp.lt.s32.totalorder %v306, 7
  %v308 = vsel %vm307, %v303, %v304
  %v309 = vsel %vm307, %v302, %v303
  %v310 = vsel %vm307, %v301, %v302
  %v311 = vsel %vm307, %v300, %v301
  %v312 = vsel %vm307, %v299, %v300
  %v313 = vsel %vm307, %v298, %v299
  %v314 = vsel %vm307, %v297, %v298
  %v315 = vsel %vm307, %v296, %v297
  %v316 = vsel %vm307, %v295, %v296
  %v317 = vsel %vm307, %v294, %v295
  %v318 = vsel %vm307, %v293, %v294
  %v319 = vsel %vm307, %v292, %v293
  %v320 = vsel %vm307, %v291, %v292
  %v321 = vsel %vm307, %v290, %v291
  %v322 = vsel %vm307, %v289, %v290
  %v323 = vsel %vm307, %v304, %v289
  %324 = vrot.lane.b32.xlu0 %v322, 104
  %v325 = vpop.permute.xlu0 %324
  %326 = vrot.lane.b32.xlu0 %v321, 104
  %v327 = vpop.permute.xlu0 %326
  %328 = vrot.lane.b32.xlu0 %v320, 104
  %v329 = vpop.permute.xlu0 %328
  %330 = vrot.lane.b32.xlu0 %v319, 104
  %v331 = vpop.permute.xlu0 %330
  %332 = vrot.lane.b32.xlu0 %v318, 104
  %v333 = vpop.permute.xlu0 %332
  %334 = vrot.lane.b32.xlu0 %v317, 104
  %v335 = vpop.permute.xlu0 %334
  %336 = vrot.lane.b32.xlu0 %v316, 104
  %v337 = vpop.permute.xlu0 %336
  %338 = vrot.lane.b32.xlu0 %v315, 104
  %v339 = vpop.permute.xlu0 %338
  %340 = vrot.lane.b32.xlu0 %v314, 104
  %v341 = vpop.permute.xlu0 %340
  %342 = vrot.lane.b32.xlu0 %v313, 104
  %v343 = vpop.permute.xlu0 %342
  %344 = vrot.lane.b32.xlu0 %v312, 104
  %v345 = vpop.permute.xlu0 %344
  %346 = vrot.lane.b32.xlu0 %v311, 104
  %v347 = vpop.permute.xlu0 %346
  %348 = vrot.lane.b32.xlu0 %v310, 104
  %v349 = vpop.permute.xlu0 %348
  %350 = vrot.lane.b32.xlu0 %v309, 104
  %v351 = vpop.permute.xlu0 %350
  %352 = vrot.lane.b32.xlu0 %v308, 104
  %v353 = vpop.permute.xlu0 %352
  %354 = vrot.lane.b32.xlu0 %v323, 104
  %v355 = vpop.permute.xlu0 %354
  %v356 = vadd.f32 %v211, %v325
  %v357 = vadd.f32 %v216, %v327
  %v358 = vadd.f32 %v221, %v329
  %v359 = vadd.f32 %v226, %v331
  %v360 = vadd.f32 %v231, %v333
  %v361 = vadd.f32 %v236, %v335
  %v362 = vadd.f32 %v241, %v337
  %v363 = vadd.f32 %v246, %v339
  %v364 = vadd.f32 %v251, %v341
  %v365 = vadd.f32 %v256, %v343
  %v366 = vadd.f32 %v261, %v345
  %v367 = vadd.f32 %v266, %v347
  %v368 = vadd.f32 %v271, %v349
  %v369 = vadd.f32 %v276, %v351
  %v370 = vadd.f32 %v281, %v353
  %v371 = vadd.f32 %v286, %v355
  %v372 = vrot.slane %v211, 2
  %v373 = vrot.slane %v216, 2
  %v374 = vrot.slane %v221, 2
  %v375 = vrot.slane %v226, 2
  %v376 = vrot.slane %v231, 2
  %v377 = vrot.slane %v236, 2
  %v378 = vrot.slane %v241, 2
  %v379 = vrot.slane %v246, 2
  %v380 = vrot.slane %v251, 2
  %v381 = vrot.slane %v256, 2
  %v382 = vrot.slane %v261, 2
  %v383 = vrot.slane %v266, 2
  %v384 = vrot.slane %v271, 2
  %v385 = vrot.slane %v276, 2
  %v386 = vrot.slane %v281, 2
  %v387 = vrot.slane %v286, 2
  %vm388 = vcmp.lt.s32.totalorder %v306, 6
  %v389 = vsel %vm388, %v386, %v387
  %v390 = vsel %vm388, %v385, %v386
  %v391 = vsel %vm388, %v384, %v385
  %v392 = vsel %vm388, %v383, %v384
  %v393 = vsel %vm388, %v382, %v383
  %v394 = vsel %vm388, %v381, %v382
  %v395 = vsel %vm388, %v380, %v381
  %v396 = vsel %vm388, %v379, %v380
  %v397 = vsel %vm388, %v378, %v379
  %v398 = vsel %vm388, %v377, %v378
  %v399 = vsel %vm388, %v376, %v377
  %v400 = vsel %vm388, %v375, %v376
  %v401 = vsel %vm388, %v374, %v375
  %v402 = vsel %vm388, %v373, %v374
  %v403 = vsel %vm388, %v372, %v373
  %v404 = vsel %vm388, %v387, %v372
  %405 = vrot.lane.b32.xlu0 %v403, 80
  %v406 = vpop.permute.xlu0 %405
  %407 = vrot.lane.b32.xlu0 %v402, 80
  %v408 = vpop.permute.xlu0 %407
  %409 = vrot.lane.b32.xlu0 %v401, 80
  %v410 = vpop.permute.xlu0 %409
  %411 = vrot.lane.b32.xlu0 %v400, 80
  %v412 = vpop.permute.xlu0 %411
  %413 = vrot.lane.b32.xlu0 %v399, 80
  %v414 = vpop.permute.xlu0 %413
  %415 = vrot.lane.b32.xlu0 %v398, 80
  %v416 = vpop.permute.xlu0 %415
  %417 = vrot.lane.b32.xlu0 %v397, 80
  %v418 = vpop.permute.xlu0 %417
  %419 = vrot.lane.b32.xlu0 %v396, 80
  %v420 = vpop.permute.xlu0 %419
  %421 = vrot.lane.b32.xlu0 %v395, 80
  %v422 = vpop.permute.xlu0 %421
  %423 = vrot.lane.b32.xlu0 %v394, 80
  %v424 = vpop.permute.xlu0 %423
  %425 = vrot.lane.b32.xlu0 %v393, 80
  %v426 = vpop.permute.xlu0 %425
  %427 = vrot.lane.b32.xlu0 %v392, 80
  %v428 = vpop.permute.xlu0 %427
  %429 = vrot.lane.b32.xlu0 %v391, 80
  %v430 = vpop.permute.xlu0 %429
  %431 = vrot.lane.b32.xlu0 %v390, 80
  %v432 = vpop.permute.xlu0 %431
  %433 = vrot.lane.b32.xlu0 %v389, 80
  %v434 = vpop.permute.xlu0 %433
  %435 = vrot.lane.b32.xlu0 %v404, 80
  %v436 = vpop.permute.xlu0 %435
  %v437 = vadd.f32 %v356, %v406
  %v438 = vadd.f32 %v357, %v408
  %v439 = vadd.f32 %v358, %v410
  %v440 = vadd.f32 %v359, %v412
  %v441 = vadd.f32 %v360, %v414
  %v442 = vadd.f32 %v361, %v416
  %v443 = vadd.f32 %v362, %v418
  %v444 = vadd.f32 %v363, %v420
  %v445 = vadd.f32 %v364, %v422
  %v446 = vadd.f32 %v365, %v424
  %v447 = vadd.f32 %v366, %v426
  %v448 = vadd.f32 %v367, %v428
  %v449 = vadd.f32 %v368, %v430
  %v450 = vadd.f32 %v369, %v432
  %v451 = vadd.f32 %v370, %v434
  %v452 = vadd.f32 %v371, %v436
  %v453 = vrot.slane %v211, 3
  %v454 = vrot.slane %v216, 3
  %v455 = vrot.slane %v221, 3
  %v456 = vrot.slane %v226, 3
  %v457 = vrot.slane %v231, 3
  %v458 = vrot.slane %v236, 3
  %v459 = vrot.slane %v241, 3
  %v460 = vrot.slane %v246, 3
  %v461 = vrot.slane %v251, 3
  %v462 = vrot.slane %v256, 3
  %v463 = vrot.slane %v261, 3
  %v464 = vrot.slane %v266, 3
  %v465 = vrot.slane %v271, 3
  %v466 = vrot.slane %v276, 3
  %v467 = vrot.slane %v281, 3
  %v468 = vrot.slane %v286, 3
  %vm469 = vcmp.lt.s32.totalorder %v306, 5
  %v470 = vsel %vm469, %v467, %v468
  %v471 = vsel %vm469, %v466, %v467
  %v472 = vsel %vm469, %v465, %v466
  %v473 = vsel %vm469, %v464, %v465
  %v474 = vsel %vm469, %v463, %v464
  %v475 = vsel %vm469, %v462, %v463
  %v476 = vsel %vm469, %v461, %v462
  %v477 = vsel %vm469, %v460, %v461
  %v478 = vsel %vm469, %v459, %v460
  %v479 = vsel %vm469, %v458, %v459
  %v480 = vsel %vm469, %v457, %v458
  %v481 = vsel %vm469, %v456, %v457
  %v482 = vsel %vm469, %v455, %v456
  %v483 = vsel %vm469, %v454, %v455
  %v484 = vsel %vm469, %v453, %v454
  %v485 = vsel %vm469, %v468, %v453
  %486 = vrot.lane.b32.xlu0 %v484, 56
  %v487 = vpop.permute.xlu0 %486
  %488 = vrot.lane.b32.xlu0 %v483, 56
  %v489 = vpop.permute.xlu0 %488
  %490 = vrot.lane.b32.xlu0 %v482, 56
  %v491 = vpop.permute.xlu0 %490
  %492 = vrot.lane.b32.xlu0 %v481, 56
  %v493 = vpop.permute.xlu0 %492
  %494 = vrot.lane.b32.xlu0 %v480, 56
  %v495 = vpop.permute.xlu0 %494
  %496 = vrot.lane.b32.xlu0 %v479, 56
  %v497 = vpop.permute.xlu0 %496
  %498 = vrot.lane.b32.xlu0 %v478, 56
  %v499 = vpop.permute.xlu0 %498
  %500 = vrot.lane.b32.xlu0 %v477, 56
  %v501 = vpop.permute.xlu0 %500
  %502 = vrot.lane.b32.xlu0 %v476, 56
  %v503 = vpop.permute.xlu0 %502
  %504 = vrot.lane.b32.xlu0 %v475, 56
  %v505 = vpop.permute.xlu0 %504
  %506 = vrot.lane.b32.xlu0 %v474, 56
  %v507 = vpop.permute.xlu0 %506
  %508 = vrot.lane.b32.xlu0 %v473, 56
  %v509 = vpop.permute.xlu0 %508
  %510 = vrot.lane.b32.xlu0 %v472, 56
  %v511 = vpop.permute.xlu0 %510
  %512 = vrot.lane.b32.xlu0 %v471, 56
  %v513 = vpop.permute.xlu0 %512
  %514 = vrot.lane.b32.xlu0 %v470, 56
  %v515 = vpop.permute.xlu0 %514
  %516 = vrot.lane.b32.xlu0 %v485, 56
  %v517 = vpop.permute.xlu0 %516
  %v518 = vadd.f32 %v437, %v487
  %v519 = vadd.f32 %v438, %v489
  %v520 = vadd.f32 %v439, %v491
  %v521 = vadd.f32 %v440, %v493
  %v522 = vadd.f32 %v441, %v495
  %v523 = vadd.f32 %v442, %v497
  %v524 = vadd.f32 %v443, %v499
  %v525 = vadd.f32 %v444, %v501
  %v526 = vadd.f32 %v445, %v503
  %v527 = vadd.f32 %v446, %v505
  %v528 = vadd.f32 %v447, %v507
  %v529 = vadd.f32 %v448, %v509
  %v530 = vadd.f32 %v449, %v511
  %v531 = vadd.f32 %v450, %v513
  %v532 = vadd.f32 %v451, %v515
  %v533 = vadd.f32 %v452, %v517
  %v534 = vrot.slane %v211, 4
  %v535 = vrot.slane %v216, 4
  %v536 = vrot.slane %v221, 4
  %v537 = vrot.slane %v226, 4
  %v538 = vrot.slane %v231, 4
  %v539 = vrot.slane %v236, 4
  %v540 = vrot.slane %v241, 4
  %v541 = vrot.slane %v246, 4
  %v542 = vrot.slane %v251, 4
  %v543 = vrot.slane %v256, 4
  %v544 = vrot.slane %v261, 4
  %v545 = vrot.slane %v266, 4
  %v546 = vrot.slane %v271, 4
  %v547 = vrot.slane %v276, 4
  %v548 = vrot.slane %v281, 4
  %v549 = vrot.slane %v286, 4
  %vm550 = vcmp.lt.s32.totalorder %v306, 4
  %v551 = vsel %vm550, %v548, %v549
  %v552 = vsel %vm550, %v547, %v548
  %v553 = vsel %vm550, %v546, %v547
  %v554 = vsel %vm550, %v545, %v546
  %v555 = vsel %vm550, %v544, %v545
  %v556 = vsel %vm550, %v543, %v544
  %v557 = vsel %vm550, %v542, %v543
  %v558 = vsel %vm550, %v541, %v542
  %v559 = vsel %vm550, %v540, %v541
  %v560 = vsel %vm550, %v539, %v540
  %v561 = vsel %vm550, %v538, %v539
  %v562 = vsel %vm550, %v537, %v538
  %v563 = vsel %vm550, %v536, %v537
  %v564 = vsel %vm550, %v535, %v536
  %v565 = vsel %vm550, %v534, %v535
  %v566 = vsel %vm550, %v549, %v534
  %567 = vrot.lane.b32.xlu0 %v565, 32
  %v568 = vpop.permute.xlu0 %567
  %569 = vrot.lane.b32.xlu0 %v564, 32
  %v570 = vpop.permute.xlu0 %569
  %571 = vrot.lane.b32.xlu0 %v563, 32
  %v572 = vpop.permute.xlu0 %571
  %573 = vrot.lane.b32.xlu0 %v562, 32
  %v574 = vpop.permute.xlu0 %573
  %575 = vrot.lane.b32.xlu0 %v561, 32
  %v576 = vpop.permute.xlu0 %575
  %577 = vrot.lane.b32.xlu0 %v560, 32
  %v578 = vpop.permute.xlu0 %577
  %579 = vrot.lane.b32.xlu0 %v559, 32
  %v580 = vpop.permute.xlu0 %579
  %581 = vrot.lane.b32.xlu0 %v558, 32
  %v582 = vpop.permute.xlu0 %581
  %583 = vrot.lane.b32.xlu0 %v557, 32
  %v584 = vpop.permute.xlu0 %583
  %585 = vrot.lane.b32.xlu0 %v556, 32
  %v586 = vpop.permute.xlu0 %585
  %587 = vrot.lane.b32.xlu0 %v555, 32
  %v588 = vpop.permute.xlu0 %587
  %589 = vrot.lane.b32.xlu0 %v554, 32
  %v590 = vpop.permute.xlu0 %589
  %591 = vrot.lane.b32.xlu0 %v553, 32
  %v592 = vpop.permute.xlu0 %591
  %593 = vrot.lane.b32.xlu0 %v552, 32
  %v594 = vpop.permute.xlu0 %593
  %595 = vrot.lane.b32.xlu0 %v551, 32
  %v596 = vpop.permute.xlu0 %595
  %597 = vrot.lane.b32.xlu0 %v566, 32
  %v598 = vpop.permute.xlu0 %597
  %v599 = vadd.f32 %v518, %v568
  %v600 = vadd.f32 %v519, %v570
  %v601 = vadd.f32 %v520, %v572
  %v602 = vadd.f32 %v521, %v574
  %v603 = vadd.f32 %v522, %v576
  %v604 = vadd.f32 %v523, %v578
  %v605 = vadd.f32 %v524, %v580
  %v606 = vadd.f32 %v525, %v582
  %v607 = vadd.f32 %v526, %v584
  %v608 = vadd.f32 %v527, %v586
  %v609 = vadd.f32 %v528, %v588
  %v610 = vadd.f32 %v529, %v590
  %v611 = vadd.f32 %v530, %v592
  %v612 = vadd.f32 %v531, %v594
  %v613 = vadd.f32 %v532, %v596
  %v614 = vadd.f32 %v533, %v598
  %vm615 = vcmp.ge.s32.totalorder %v31, 0
  %vm616 = vcmp.lt.s32.totalorder %v31, 8
  %vm617 = vmand %vm615, %vm616
  %v618 = vsel %vm617, 3, 5
  %vm619 = vcmp.ge.s32.totalorder %v31, 8
  %vm620 = vcmp.lt.s32.totalorder %v31, 16
  %vm621 = vmand %vm619, %vm620
  %v622 = vsel %vm621, 4, %v618
  %vm623 = vcmp.ge.s32.totalorder %v31, 16
  %vm624 = vcmp.lt.s32.totalorder %v31, 24
  %vm625 = vmand %vm623, %vm624
  %v626 = vsel %vm625, 5, %v622
  %v627 = vadd.s32 %v306, 8
  %v628 = vadd.s32 %v306, 16
  %v629 = vadd.s32 %v306, 24
  %v630 = vadd.s32 %v306, 32
  %v631 = vadd.s32 %v306, 40
  %v632 = vadd.s32 %v306, 48
  %v633 = vadd.s32 %v306, 56
  %v634 = vadd.s32 %v306, 64
  %v635 = vadd.s32 %v306, 72
  %v636 = vadd.s32 %v306, 80
  %v637 = vadd.s32 %v306, 88
  %v638 = vadd.s32 %v306, 96
  %v639 = vadd.s32 %v306, 104
  %v640 = vadd.s32 %v306, 112
  %v641 = vadd.s32 %v306, 120
  %vm642 = vcmp.lt.s32.totalorder %v306, 0
  %v643 = vsub.s32 0, %v306
  %v644 = vsel %vm642, %v643, %v306
  %v645 = vshrl.u32 %v644, 4
  %v646 = vand.u32 %v644, 15
  %v647 = vsub.s32 0, %v646
  %v648 = vsel %vm642, %v647, %v646
  %vm649 = vcmp.lt.s32.totalorder %v627, 0
  %v650 = vsub.s32 0, %v627
  %v651 = vsel %vm649, %v650, %v627
  %v652 = vshrl.u32 %v651, 4
  %v653 = vand.u32 %v651, 15
  %v654 = vsub.s32 0, %v653
  %v655 = vsel %vm649, %v654, %v653
  %vm656 = vcmp.lt.s32.totalorder %v628, 0
  %v657 = vsub.s32 0, %v628
  %v658 = vsel %vm656, %v657, %v628
  %v659 = vshrl.u32 %v658, 4
  %v660 = vand.u32 %v658, 15
  %v661 = vsub.s32 0, %v660
  %v662 = vsel %vm656, %v661, %v660
  %vm663 = vcmp.lt.s32.totalorder %v629, 0
  %v664 = vsub.s32 0, %v629
  %v665 = vsel %vm663, %v664, %v629
  %v666 = vshrl.u32 %v665, 4
  %v667 = vand.u32 %v665, 15
  %v668 = vsub.s32 0, %v667
  %v669 = vsel %vm663, %v668, %v667
  %vm670 = vcmp.lt.s32.totalorder %v630, 0
  %v671 = vsub.s32 0, %v630
  %v672 = vsel %vm670, %v671, %v630
  %v673 = vshrl.u32 %v672, 4
  %v674 = vand.u32 %v672, 15
  %v675 = vsub.s32 0, %v674
  %v676 = vsel %vm670, %v675, %v674
  %vm677 = vcmp.lt.s32.totalorder %v631, 0
  %v678 = vsub.s32 0, %v631
  %v679 = vsel %vm677, %v678, %v631
  %v680 = vshrl.u32 %v679, 4
  %v681 = vand.u32 %v679, 15
  %v682 = vsub.s32 0, %v681
  %v683 = vsel %vm677, %v682, %v681
  %vm684 = vcmp.lt.s32.totalorder %v632, 0
  %v685 = vsub.s32 0, %v632
  %v686 = vsel %vm684, %v685, %v632
  %v687 = vshrl.u32 %v686, 4
  %v688 = vand.u32 %v686, 15
  %v689 = vsub.s32 0, %v688
  %v690 = vsel %vm684, %v689, %v688
  %vm691 = vcmp.lt.s32.totalorder %v633, 0
  %v692 = vsub.s32 0, %v633
  %v693 = vsel %vm691, %v692, %v633
  %v694 = vshrl.u32 %v693, 4
  %v695 = vand.u32 %v693, 15
  %v696 = vsub.s32 0, %v695
  %v697 = vsel %vm691, %v696, %v695
  %vm698 = vcmp.lt.s32.totalorder %v634, 0
  %v699 = vsub.s32 0, %v634
  %v700 = vsel %vm698, %v699, %v634
  %v701 = vshrl.u32 %v700, 4
  %v702 = vand.u32 %v700, 15
  %v703 = vsub.s32 0, %v702
  %v704 = vsel %vm698, %v703, %v702
  %vm705 = vcmp.lt.s32.totalorder %v635, 0
  %v706 = vsub.s32 0, %v635
  %v707 = vsel %vm705, %v706, %v635
  %v708 = vshrl.u32 %v707, 4
  %v709 = vand.u32 %v707, 15
  %v710 = vsub.s32 0, %v709
  %v711 = vsel %vm705, %v710, %v709
  %vm712 = vcmp.lt.s32.totalorder %v636, 0
  %v713 = vsub.s32 0, %v636
  %v714 = vsel %vm712, %v713, %v636
  %v715 = vshrl.u32 %v714, 4
  %v716 = vand.u32 %v714, 15
  %v717 = vsub.s32 0, %v716
  %v718 = vsel %vm712, %v717, %v716
  %vm719 = vcmp.lt.s32.totalorder %v637, 0
  %v720 = vsub.s32 0, %v637
  %v721 = vsel %vm719, %v720, %v637
  %v722 = vshrl.u32 %v721, 4
  %v723 = vand.u32 %v721, 15
  %v724 = vsub.s32 0, %v723
  %v725 = vsel %vm719, %v724, %v723
  %vm726 = vcmp.lt.s32.totalorder %v638, 0
  %v727 = vsub.s32 0, %v638
  %v728 = vsel %vm726, %v727, %v638
  %v729 = vshrl.u32 %v728, 4
  %v730 = vand.u32 %v728, 15
  %v731 = vsub.s32 0, %v730
  %v732 = vsel %vm726, %v731, %v730
  %vm733 = vcmp.lt.s32.totalorder %v639, 0
  %v734 = vsub.s32 0, %v639
  %v735 = vsel %vm733, %v734, %v639
  %v736 = vshrl.u32 %v735, 4
  %v737 = vand.u32 %v735, 15
  %v738 = vsub.s32 0, %v737
  %v739 = vsel %vm733, %v738, %v737
  %vm740 = vcmp.lt.s32.totalorder %v640, 0
  %v741 = vsub.s32 0, %v640
  %v742 = vsel %vm740, %v741, %v640
  %v743 = vshrl.u32 %v742, 4
  %v744 = vand.u32 %v742, 15
  %v745 = vsub.s32 0, %v744
  %v746 = vsel %vm740, %v745, %v744
  %vm747 = vcmp.lt.s32.totalorder %v641, 0
  %v748 = vsub.s32 0, %v641
  %v749 = vsel %vm747, %v748, %v641
  %v750 = vshrl.u32 %v749, 4
  %v751 = vand.u32 %v749, 15
  %v752 = vsub.s32 0, %v751
  %v753 = vsel %vm747, %v752, %v751
  %vm754 = vcmp.ne.s32.totalorder %v648, 0
  %vm755 = vcmp.ne.s32.totalorder %v655, 0
  %vm756 = vcmp.ne.s32.totalorder %v662, 0
  %vm757 = vcmp.ne.s32.totalorder %v669, 0
  %vm758 = vcmp.ne.s32.totalorder %v676, 0
  %vm759 = vcmp.ne.s32.totalorder %v683, 0
  %vm760 = vcmp.ne.s32.totalorder %v690, 0
  %vm761 = vcmp.ne.s32.totalorder %v697, 0
  %vm762 = vcmp.ne.s32.totalorder %v704, 0
  %vm763 = vcmp.ne.s32.totalorder %v711, 0
  %vm764 = vcmp.ne.s32.totalorder %v718, 0
  %vm765 = vcmp.ne.s32.totalorder %v725, 0
  %vm766 = vcmp.ne.s32.totalorder %v732, 0
  %vm767 = vcmp.ne.s32.totalorder %v739, 0
  %vm768 = vcmp.ne.s32.totalorder %v746, 0
  %vm769 = vcmp.ne.s32.totalorder %v753, 0
  %vm770 = vcmp.lt.s32.totalorder %v648, 0
  %vm771 = vcmp.lt.s32.totalorder %v655, 0
  %vm772 = vcmp.lt.s32.totalorder %v662, 0
  %vm773 = vcmp.lt.s32.totalorder %v669, 0
  %vm774 = vcmp.lt.s32.totalorder %v676, 0
  %vm775 = vcmp.lt.s32.totalorder %v683, 0
  %vm776 = vcmp.lt.s32.totalorder %v690, 0
  %vm777 = vcmp.lt.s32.totalorder %v697, 0
  %vm778 = vcmp.lt.s32.totalorder %v704, 0
  %vm779 = vcmp.lt.s32.totalorder %v711, 0
  %vm780 = vcmp.lt.s32.totalorder %v718, 0
  %vm781 = vcmp.lt.s32.totalorder %v725, 0
  %vm782 = vcmp.lt.s32.totalorder %v732, 0
  %vm783 = vcmp.lt.s32.totalorder %v739, 0
  %vm784 = vcmp.lt.s32.totalorder %v746, 0
  %vm785 = vcmp.lt.s32.totalorder %v753, 0
  %vm786 = vmand %vm770, %vm754
  %vm787 = vmand %vm771, %vm755
  %vm788 = vmand %vm772, %vm756
  %vm789 = vmand %vm773, %vm757
  %vm790 = vmand %vm774, %vm758
  %vm791 = vmand %vm775, %vm759
  %vm792 = vmand %vm776, %vm760
  %vm793 = vmand %vm777, %vm761
  %vm794 = vmand %vm778, %vm762
  %vm795 = vmand %vm779, %vm763
  %vm796 = vmand %vm780, %vm764
  %vm797 = vmand %vm781, %vm765
  %vm798 = vmand %vm782, %vm766
  %vm799 = vmand %vm783, %vm767
  %vm800 = vmand %vm784, %vm768
  %vm801 = vmand %vm785, %vm769
  %v802 = vadd.s32 %v648, 16
  %v803 = vadd.s32 %v655, 16
  %v804 = vadd.s32 %v662, 16
  %v805 = vadd.s32 %v669, 16
  %v806 = vadd.s32 %v676, 16
  %v807 = vadd.s32 %v683, 16
  %v808 = vadd.s32 %v690, 16
  %v809 = vadd.s32 %v697, 16
  %v810 = vadd.s32 %v704, 16
  %v811 = vadd.s32 %v711, 16
  %v812 = vadd.s32 %v718, 16
  %v813 = vadd.s32 %v725, 16
  %v814 = vadd.s32 %v732, 16
  %v815 = vadd.s32 %v739, 16
  %v816 = vadd.s32 %v746, 16
  %v817 = vadd.s32 %v753, 16
  %v818 = vsel %vm786, %v802, %v648
  %v819 = vsel %vm787, %v803, %v655
  %v820 = vsel %vm788, %v804, %v662
  %v821 = vsel %vm789, %v805, %v669
  %v822 = vsel %vm790, %v806, %v676
  %v823 = vsel %vm791, %v807, %v683
  %v824 = vsel %vm792, %v808, %v690
  %v825 = vsel %vm793, %v809, %v697
  %v826 = vsel %vm794, %v810, %v704
  %v827 = vsel %vm795, %v811, %v711
  %v828 = vsel %vm796, %v812, %v718
  %v829 = vsel %vm797, %v813, %v725
  %v830 = vsel %vm798, %v814, %v732
  %v831 = vsel %vm799, %v815, %v739
  %v832 = vsel %vm800, %v816, %v746
  %v833 = vsel %vm801, %v817, %v753
  %v834 = vsub.s32 16, %v626
  %v835 = vadd.s32 %v834, 1
  %vm836 = vcmp.lt.s32.totalorder %v818, %v835
  %vm837 = vcmp.lt.s32.totalorder %v819, %v835
  %vm838 = vcmp.lt.s32.totalorder %v820, %v835
  %vm839 = vcmp.lt.s32.totalorder %v821, %v835
  %vm840 = vcmp.lt.s32.totalorder %v822, %v835
  %vm841 = vcmp.lt.s32.totalorder %v823, %v835
  %vm842 = vcmp.lt.s32.totalorder %v824, %v835
  %vm843 = vcmp.lt.s32.totalorder %v825, %v835
  %vm844 = vcmp.lt.s32.totalorder %v826, %v835
  %vm845 = vcmp.lt.s32.totalorder %v827, %v835
  %vm846 = vcmp.lt.s32.totalorder %v828, %v835
  %vm847 = vcmp.lt.s32.totalorder %v829, %v835
  %vm848 = vcmp.lt.s32.totalorder %v830, %v835
  %vm849 = vcmp.lt.s32.totalorder %v831, %v835
  %vm850 = vcmp.lt.s32.totalorder %v832, %v835
  %vm851 = vcmp.lt.s32.totalorder %v833, %v835
  %v852 = vsel %vm836, %v599, -3.4028235e+38
  %v853 = vsel %vm837, %v600, -3.4028235e+38
  %v854 = vsel %vm838, %v601, -3.4028235e+38
  %v855 = vsel %vm839, %v602, -3.4028235e+38
  %v856 = vsel %vm840, %v603, -3.4028235e+38
  %v857 = vsel %vm841, %v604, -3.4028235e+38
  %v858 = vsel %vm842, %v605, -3.4028235e+38
  %v859 = vsel %vm843, %v606, -3.4028235e+38
  %v860 = vsel %vm844, %v607, -3.4028235e+38
  %v861 = vsel %vm845, %v608, -3.4028235e+38
  %v862 = vsel %vm846, %v609, -3.4028235e+38
  %v863 = vsel %vm847, %v610, -3.4028235e+38
  %v864 = vsel %vm848, %v611, -3.4028235e+38
  %v865 = vsel %vm849, %v612, -3.4028235e+38
  %v866 = vsel %vm850, %v613, -3.4028235e+38
  %v867 = vsel %vm851, %v614, -3.4028235e+38
  %v868 = vmax.f32 %v852, %v853
  %v869 = vrot.slane %v868, 4
  %v870 = vmax.f32 %v868, %v869
  %v871 = vrot.slane %v870, 2
  %v872 = vmax.f32 %v870, %v871
  %v873 = vrot.slane %v872, 1
  %v874 = vmax.f32 %v872, %v873
  %v875 = vmax.f32 %v854, %v855
  %v876 = vrot.slane %v875, 4
  %v877 = vmax.f32 %v875, %v876
  %v878 = vrot.slane %v877, 2
  %v879 = vmax.f32 %v877, %v878
  %v880 = vrot.slane %v879, 1
  %v881 = vmax.f32 %v879, %v880
  %v882 = vmax.f32 %v856, %v857
  %v883 = vrot.slane %v882, 4
  %v884 = vmax.f32 %v882, %v883
  %v885 = vrot.slane %v884, 2
  %v886 = vmax.f32 %v884, %v885
  %v887 = vrot.slane %v886, 1
  %v888 = vmax.f32 %v886, %v887
  %v889 = vmax.f32 %v858, %v859
  %v890 = vrot.slane %v889, 4
  %v891 = vmax.f32 %v889, %v890
  %v892 = vrot.slane %v891, 2
  %v893 = vmax.f32 %v891, %v892
  %v894 = vrot.slane %v893, 1
  %v895 = vmax.f32 %v893, %v894
  %v896 = vmax.f32 %v860, %v861
  %v897 = vrot.slane %v896, 4
  %v898 = vmax.f32 %v896, %v897
  %v899 = vrot.slane %v898, 2
  %v900 = vmax.f32 %v898, %v899
  %v901 = vrot.slane %v900, 1
  %v902 = vmax.f32 %v900, %v901
  %v903 = vmax.f32 %v862, %v863
  %v904 = vrot.slane %v903, 4
  %v905 = vmax.f32 %v903, %v904
  %v906 = vrot.slane %v905, 2
  %v907 = vmax.f32 %v905, %v906
  %v908 = vrot.slane %v907, 1
  %v909 = vmax.f32 %v907, %v908
  %v910 = vmax.f32 %v864, %v865
  %v911 = vrot.slane %v910, 4
  %v912 = vmax.f32 %v910, %v911
  %v913 = vrot.slane %v912, 2
  %v914 = vmax.f32 %v912, %v913
  %v915 = vrot.slane %v914, 1
  %v916 = vmax.f32 %v914, %v915
  %v917 = vmax.f32 %v866, %v867
  %v918 = vrot.slane %v917, 4
  %v919 = vmax.f32 %v917, %v918
  %v920 = vrot.slane %v919, 2
  %v921 = vmax.f32 %v919, %v920
  %v922 = vrot.slane %v921, 1
  %v923 = vmax.f32 %v921, %v922
  %v924 = vld [vmem:[%s2] sm:$0x1]
  %v926 = vlaneseq
  %v927 = vshrl.u32 %v926, 7
  %v928 = vsub.s32 0, %v927
  %v929 = vrot.slane %v924, %v928
  %v931 = vadd.f32 %v874, %v929
  %v932 = vadd.f32 %v881, %v929
  %v933 = vadd.f32 %v888, %v929
  %v934 = vadd.f32 %v895, %v929
  %v935 = vadd.f32 %v902, %v929
  %v936 = vadd.f32 %v909, %v929
  %v937 = vadd.f32 %v916, %v929
  %v938 = vadd.f32 %v923, %v929
  %v939 = vmax.f32 %v931, 0.0
  %v940 = vmax.f32 %v932, 0.0
  %v941 = vmax.f32 %v933, 0.0
  %v942 = vmax.f32 %v934, 0.0
  %v943 = vmax.f32 %v935, 0.0
  %v944 = vmax.f32 %v936, 0.0
  %v945 = vmax.f32 %v937, 0.0
  %v946 = vmax.f32 %v938, 0.0
  %v947 = vsel %vm624, 1, 0
  %vm948 = vcmp.eq.s32.totalorder %v947, 1
  %v957 = vrot.slane %v940, 7
  %vm958 = vcmask 1041409
  %v959 = vsel %vm958, %v957, %v939
  %v960 = vrot.slane %v941, 6
  %vm961 = vcmask 1042434
  %v962 = vsel %vm961, %v960, %v959
  %v963 = vrot.slane %v942, 5
  %vm964 = vcmask 1043459
  %v965 = vsel %vm964, %v963, %v962
  %v966 = vrot.slane %v943, 4
  %vm967 = vcmask 1044484
  %v968 = vsel %vm967, %v966, %v965
  %v969 = vrot.slane %v944, 3
  %vm970 = vcmask 1045509
  %v971 = vsel %vm970, %v969, %v968
  %v972 = vrot.slane %v945, 2
  %vm973 = vcmask 1046534
  %v974 = vsel %vm973, %v972, %v971
  %v975 = vrot.slane %v946, 1
  %vm976 = vcmask 1047559
  %v977 = vsel %vm976, %v975, %v974
  %v979 = vsel %vm948, %v977, 0.0
  %980 = vst [vmem:[%s3] sm:$0xff] %v979
  // Predicated region
  $region14: #{sentiment_cnn_forward.1} parent=0 // pred_check
    _
  $region15: #{sentiment_cnn_forward.1} parent=0 // pred_check_branch
    %982 = sbr.rel (0) target = $region17
  $region16: #{sentiment_cnn_forward.1} parent=0 // pred_region
    _
  $region17: #{sentiment_cnn_forward.1} parent=0 // pred_fallthru
    _
  // Predicated region
  $region18: #{sentiment_cnn_forward.1} parent=0 // pred_check
    _
  $region19: #{sentiment_cnn_forward.1} parent=0 // pred_check_branch
    %984 = sbr.rel (0) target = $region21
  $region20: #{sentiment_cnn_forward.1} parent=0 // pred_region
    _
  $region21: #{sentiment_cnn_forward.1} parent=0 // pred_fallthru
    _

</llo_original>
